<compile_context>
chip_gen: v5e
topology: v5e:2x2
jax: 0.10.0
libtpu: 0.0.40
codegen_flags: <defaults>
</compile_context>

<pallas_src>
import functools

import jax
import jax.numpy as jnp
from jax.experimental import pallas as pl
from jax.experimental.pallas import tpu as pltpu


def _round_up(x: int, m: int) -> int:
    return ((x + m - 1) // m) * m


def _quadcdd_loss_kernel(alpha_ref, pred_ref, tgt_ref, out_ref, acc_ref, *, inv_b):
    """One grid step processes a (4, TILE_B) lane-dense slab of the batch.

    alpha_ref : SMEM (4,)        per-component weights
    pred_ref  : VMEM (4, TILE_B) predictions (components on sublanes, batch on lanes)
    tgt_ref   : VMEM (4, TILE_B) targets (same layout)
    out_ref   : SMEM (1, 1)      final scalar loss
    acc_ref   : VMEM (1, TILE_B) running per-lane sum of sqrt terms
    """
    i = pl.program_id(0)

    @pl.when(i == 0)
    def _init():
        acc_ref[...] = jnp.zeros_like(acc_ref)

    # Unrolled per-component FMAs (VALU slot); sqrt goes to the EUP slot.
    # Everything stays lane-dense (1, TILE_B) — no cross-lane work until the
    # epilogue.
    d0 = pred_ref[pl.ds(0, 1), :] - tgt_ref[pl.ds(0, 1), :]
    d1 = pred_ref[pl.ds(1, 1), :] - tgt_ref[pl.ds(1, 1), :]
    d2 = pred_ref[pl.ds(2, 1), :] - tgt_ref[pl.ds(2, 1), :]
    d3 = pred_ref[pl.ds(3, 1), :] - tgt_ref[pl.ds(3, 1), :]

    a0 = alpha_ref[0]
    a1 = alpha_ref[1]
    a2 = alpha_ref[2]
    a3 = alpha_ref[3]

    s = a0 * d0 * d0 + a1 * d1 * d1 + a2 * d2 * d2 + a3 * d3 * d3   # (1, TILE_B)
    acc_ref[...] += jnp.sqrt(s)

    @pl.when(i == pl.num_programs(0) - 1)
    def _finalize():
        # Single cross-lane reduce + one multiply by the precomputed 1/B.
        out_ref[0, 0] = jnp.sum(acc_ref[...]) * inv_b


def quadcdd_loss(predictions: jax.Array,
                 targets: jax.Array,
                 alpha: jax.Array,
                 *,
                 tile_b: int = 32768) -> jax.Array:
    """Weighted-sqrt loss matching QuadCDDLoss.forward.

    predictions, targets: (B, 4); alpha: (4,). Returns a scalar f32.
    """
    B, D = predictions.shape
    assert D == 4 and targets.shape == (B, D) and alpha.shape == (D,)

    # Lane-dense layout: batch on the 128-lane axis.
    pred_t = predictions.astype(jnp.float32).T      # (4, B)
    tgt_t = targets.astype(jnp.float32).T           # (4, B)

    # Choose the batch tile (multiple of 128 lanes) and zero-pad the batch.
    # Zero-padded columns contribute sqrt(0) == 0 to the sum, so no masking is
    # required; we divide by the true B in the epilogue.
    tile = min(_round_up(tile_b, 128), _round_up(B, 128))
    padded_b = _round_up(B, tile)
    if padded_b != B:
        pad = padded_b - B
        pred_t = jnp.pad(pred_t, ((0, 0), (0, pad)))
        tgt_t = jnp.pad(tgt_t, ((0, 0), (0, pad)))
    n_tiles = padded_b // tile

    kernel = functools.partial(_quadcdd_loss_kernel, inv_b=1.0 / B)

    # TODO(synk): on v7x, a leading size-2 "parallel" grid axis with per-core
    # partial sums would use both TensorCores; kept single-core for portability.
    out = pl.pallas_call(
        kernel,
        out_shape=jax.ShapeDtypeStruct((1, 1), jnp.float32),
        grid=(n_tiles,),
        in_specs=[
            pl.BlockSpec(memory_space=pltpu.SMEM),         # alpha (4,) scalars
            pl.BlockSpec((4, tile), lambda i: (0, i)),     # predictions (4, B)
            pl.BlockSpec((4, tile), lambda i: (0, i)),     # targets     (4, B)
        ],
        out_specs=pl.BlockSpec(memory_space=pltpu.SMEM),
        scratch_shapes=[pltpu.VMEM((1, tile), jnp.float32)],
        compiler_params=pltpu.CompilerParams(
            dimension_semantics=("arbitrary",)),
    )(alpha.astype(jnp.float32), pred_t, tgt_t)
    return out[0, 0]


def quadcdd_loss_ref(predictions, targets, alpha):
    """Pure-JAX reference (mirror of the PyTorch forward)."""
    sq = (predictions.astype(jnp.float32) - targets.astype(jnp.float32)) ** 2
    w = alpha.astype(jnp.float32) * sq
    return jnp.mean(jnp.sqrt(jnp.sum(w, axis=1)))


if __name__ == "__main__":
    key = jax.random.PRNGKey(0)
    k1, k2, k3, k4 = jax.random.split(key, 4)

    # Deterministic "parameter" from the module's __init__ default.
    alpha = jnp.array([0.3, 0.3, 0.25, 0.15], dtype=jnp.float32)

    # Small shape matching the module signature: (batch_size, 4).
    batch_size = 8
    predictions = jax.random.uniform(k1, (batch_size, 4), dtype=jnp.float32)
    targets = jax.random.uniform(k2, (batch_size, 4), dtype=jnp.float32)

    loss = jax.block_until_ready(quadcdd_loss(predictions, targets, alpha))
    ref = quadcdd_loss_ref(predictions, targets, alpha)
    assert jnp.allclose(loss, ref, rtol=1e-5, atol=1e-5), (loss, ref)

    # Exercise the multi-tile accumulation path (grid > 1) with a small tile.
    b2 = 200
    p2 = jax.random.uniform(k3, (b2, 4), dtype=jnp.float32)
    t2 = jax.random.uniform(k4, (b2, 4), dtype=jnp.float32)
    loss2 = jax.block_until_ready(quadcdd_loss(p2, t2, alpha, tile_b=128))
    ref2 = quadcdd_loss_ref(p2, t2, alpha)
    assert jnp.allclose(loss2, ref2, rtol=1e-5, atol=1e-5), (loss2, ref2)

    print("KERNEL_OK")
</pallas_src>

<mosaic_0001>
module attributes {stable_mosaic.version = 11 : i64} {
  func.func @_quadcdd_loss_kernel(%arg0: i32, %arg1: memref<4xf32, #tpu.memory_space<smem>>, %arg2: memref<4x128xf32, #tpu.memory_space<vmem>>, %arg3: memref<4x128xf32, #tpu.memory_space<vmem>>, %arg4: memref<1x1xf32, #tpu.memory_space<smem>>, %arg5: memref<1x128xf32, #tpu.memory_space<vmem>>) attributes {dimension_semantics = [#tpu.dimension_semantics<arbitrary>], iteration_bounds = array<i64: 1>, scalar_prefetch = 0 : i64, scratch_operands = 1 : i64, tpu.core_type = #tpu.core_type<tc>, window_params = [{transform_indices = @transform_0, window_bounds = array<i64: 4>}, {transform_indices = @transform_1, window_bounds = array<i64: 4, 128>}, {transform_indices = @transform_2, window_bounds = array<i64: 4, 128>}, {transform_indices = @transform_3, window_bounds = array<i64: 1, 1>}]} {
    %c0_i32 = arith.constant 0 : i32
    %0 = arith.cmpi eq, %arg0, %c0_i32 : i32
    %1 = arith.extui %0 : i1 to i32
    %c0_i32_0 = arith.constant 0 : i32
    %2 = arith.cmpi ne, %1, %c0_i32_0 : i32
    scf.if %2 {
      %cst = arith.constant 0.000000e+00 : f32
      %41 = vector.broadcast %cst : f32 to vector<1x128xf32>
      %c0_23 = arith.constant 0 : index
      %c0_24 = arith.constant 0 : index
      %42 = vector.load %arg5[%c0_23, %c0_24] : memref<1x128xf32, #tpu.memory_space<vmem>>, vector<1x128xf32>
      tpu.vector_store %arg5[%c0_23, %c0_24], %41 {strides = array<i32>} : memref<1x128xf32, #tpu.memory_space<vmem>>, vector<1x128xf32>,
    } else {
    }
    %c0 = arith.constant 0 : index
    %c0_1 = arith.constant 0 : index
    %3 = vector.load %arg2[%c0, %c0_1] : memref<4x128xf32, #tpu.memory_space<vmem>>, vector<1x128xf32>
    %c0_2 = arith.constant 0 : index
    %c0_3 = arith.constant 0 : index
    %4 = vector.load %arg3[%c0_2, %c0_3] : memref<4x128xf32, #tpu.memory_space<vmem>>, vector<1x128xf32>
    %5 = arith.subf %3, %4 : vector<1x128xf32>
    %c1 = arith.constant 1 : index
    %c0_4 = arith.constant 0 : index
    %6 = vector.load %arg2[%c1, %c0_4] : memref<4x128xf32, #tpu.memory_space<vmem>>, vector<1x128xf32>
    %c1_5 = arith.constant 1 : index
    %c0_6 = arith.constant 0 : index
    %7 = vector.load %arg3[%c1_5, %c0_6] : memref<4x128xf32, #tpu.memory_space<vmem>>, vector<1x128xf32>
    %8 = arith.subf %6, %7 : vector<1x128xf32>
    %c2 = arith.constant 2 : index
    %c0_7 = arith.constant 0 : index
    %9 = vector.load %arg2[%c2, %c0_7] : memref<4x128xf32, #tpu.memory_space<vmem>>, vector<1x128xf32>
    %c2_8 = arith.constant 2 : index
    %c0_9 = arith.constant 0 : index
    %10 = vector.load %arg3[%c2_8, %c0_9] : memref<4x128xf32, #tpu.memory_space<vmem>>, vector<1x128xf32>
    %11 = arith.subf %9, %10 : vector<1x128xf32>
    %c3 = arith.constant 3 : index
    %c0_10 = arith.constant 0 : index
    %12 = vector.load %arg2[%c3, %c0_10] : memref<4x128xf32, #tpu.memory_space<vmem>>, vector<1x128xf32>
    %c3_11 = arith.constant 3 : index
    %c0_12 = arith.constant 0 : index
    %13 = vector.load %arg3[%c3_11, %c0_12] : memref<4x128xf32, #tpu.memory_space<vmem>>, vector<1x128xf32>
    %14 = arith.subf %12, %13 : vector<1x128xf32>
    %c0_13 = arith.constant 0 : index
    %15 = memref.load %arg1[%c0_13] : memref<4xf32, #tpu.memory_space<smem>>
    %c1_14 = arith.constant 1 : index
    %16 = memref.load %arg1[%c1_14] : memref<4xf32, #tpu.memory_space<smem>>
    %c2_15 = arith.constant 2 : index
    %17 = memref.load %arg1[%c2_15] : memref<4xf32, #tpu.memory_space<smem>>
    %c3_16 = arith.constant 3 : index
    %18 = memref.load %arg1[%c3_16] : memref<4xf32, #tpu.memory_space<smem>>
    %19 = vector.broadcast %15 : f32 to vector<1x128xf32>
    %20 = arith.mulf %19, %5 : vector<1x128xf32>
    %21 = arith.mulf %20, %5 : vector<1x128xf32>
    %22 = vector.broadcast %16 : f32 to vector<1x128xf32>
    %23 = arith.mulf %22, %8 : vector<1x128xf32>
    %24 = arith.mulf %23, %8 : vector<1x128xf32>
    %25 = arith.addf %21, %24 : vector<1x128xf32>
    %26 = vector.broadcast %17 : f32 to vector<1x128xf32>
    %27 = arith.mulf %26, %11 : vector<1x128xf32>
    %28 = arith.mulf %27, %11 : vector<1x128xf32>
    %29 = arith.addf %25, %28 : vector<1x128xf32>
    %30 = vector.broadcast %18 : f32 to vector<1x128xf32>
    %31 = arith.mulf %30, %14 : vector<1x128xf32>
    %32 = arith.mulf %31, %14 : vector<1x128xf32>
    %33 = arith.addf %29, %32 : vector<1x128xf32>
    %c0_17 = arith.constant 0 : index
    %c0_18 = arith.constant 0 : index
    %34 = vector.load %arg5[%c0_17, %c0_18] : memref<1x128xf32, #tpu.memory_space<vmem>>, vector<1x128xf32>
    %35 = math.sqrt %33 : vector<1x128xf32>
    %36 = arith.addf %34, %35 : vector<1x128xf32>
    %c0_19 = arith.constant 0 : index
    %c0_20 = arith.constant 0 : index
    %37 = vector.load %arg5[%c0_19, %c0_20] : memref<1x128xf32, #tpu.memory_space<vmem>>, vector<1x128xf32>
    tpu.vector_store %arg5[%c0_19, %c0_20], %36 {strides = array<i32>} : memref<1x128xf32, #tpu.memory_space<vmem>>, vector<1x128xf32>,
    %c0_i32_21 = arith.constant 0 : i32
    %38 = arith.cmpi eq, %arg0, %c0_i32_21 : i32
    %39 = arith.extui %38 : i1 to i32
    %c0_i32_22 = arith.constant 0 : i32
    %40 = arith.cmpi ne, %39, %c0_i32_22 : i32
    scf.if %40 {
      %c0_23 = arith.constant 0 : index
      %c0_24 = arith.constant 0 : index
      %41 = vector.load %arg5[%c0_23, %c0_24] : memref<1x128xf32, #tpu.memory_space<vmem>>, vector<1x128xf32>
      %42 = vector.shape_cast %41 : vector<1x128xf32> to vector<1x1x128xf32>
      %cst = arith.constant dense<0.000000e+00> : vector<1xf32>
      %43 = vector.multi_reduction <add>, %42, %cst [1, 2] : vector<1x1x128xf32> to vector<1xf32>
      %44 = vector.shape_cast %43 : vector<1xf32> to vector<1x1x1xf32>
      %45 = vector.extract %44[0, 0, 0] : f32 from vector<1x1x1xf32>
      %cst_25 = arith.constant 1.250000e-01 : f32
      %46 = arith.mulf %45, %cst_25 : f32
      %c0_26 = arith.constant 0 : index
      %c0_27 = arith.constant 0 : index
      %47 = memref.load %arg4[%c0_26, %c0_27] : memref<1x1xf32, #tpu.memory_space<smem>>
      memref.store %46, %arg4[%c0_26, %c0_27] : memref<1x1xf32, #tpu.memory_space<smem>>
    } else {
    }
    return
  }
  func.func @transform_0(%arg0: i32) -> i32 {
    %c0_i32 = arith.constant 0 : i32
    %c0_i32_0 = arith.constant 0 : i32
    return %c0_i32 : i32
  }
  func.func @transform_1(%arg0: i32) -> (i32, i32) {
    %c0_i32 = arith.constant 0 : i32
    %c0_i32_0 = arith.constant 0 : i32
    return %c0_i32, %arg0 : i32, i32
  }
  func.func @transform_2(%arg0: i32) -> (i32, i32) {
    %c0_i32 = arith.constant 0 : i32
    %c0_i32_0 = arith.constant 0 : i32
    return %c0_i32, %arg0 : i32, i32
  }
  func.func @transform_3(%arg0: i32) -> (i32, i32) {
    %c0_i32 = arith.constant 0 : i32
    %c0_i32_0 = arith.constant 0 : i32
    %c0_i32_1 = arith.constant 0 : i32
    return %c0_i32, %c0_i32_0 : i32, i32
  }
}

</mosaic_0001>

<llo_original>
// kernel: tpu_custom_call.1
$region0: #{tpu_custom_call.1}
  #allocation0 [shape = 'u32[]', space=smem, size = 0x4, offset = 0x4, fixed_abs, tag = 'smem constant byte address 0x4 - core index']
  #allocation1 [shape = 'u32[72,128]{1,0:T(1,128)}', space=vmem, size = 0x9000, scoped, tag = 'internal scratch']
  #allocation2 [shape = 'f32[1,128]{1,0:T(1,128)}', space=vmem, size = 0x200, scoped, tag = 'scratch operand']
  %s0 = inlined_call_operand.hbm [shape: f32[4], index: 0, kind: input, shape index: {}]
  %s1 = inlined_call_operand.hbm [shape: f32[4,128], index: 1, kind: input, shape index: {}]
  %s2 = inlined_call_operand.hbm [shape: f32[4,128], index: 2, kind: input, shape index: {}]
  %s3 = inlined_call_operand.hbm [shape: f32[1,1], index: 3, kind: output, shape index: {}]
  %s4 = sld [smem:[#allocation0]]
  $region42: #{tpu_custom_call.1} parent=0
    _
  %s6 = ssub.s32 1, %s4
  %s7 = scalar_select 0, %s6, %s4
  $region1: #{tpu_custom_call.1} parent=0
    #allocation3 [shape = 'u8[512]{0}', space=smem, size = 0x200, scoped, tag = 'input window, operand 0, single buffered']
    #allocation4 [shape = 's32[1]{0}', space=sflag, size = 0x4, scoped, tag = 'scoped memory for tpu_custom_call.1']
    #allocation5 [shape = 's32[1]{0}', space=sflag, size = 0x4, scoped, tag = 'scoped memory for tpu_custom_call.1']
    #allocation6 [shape = 's32[1]{0}', space=sflag, size = 0x4, scoped, tag = 'scoped memory for tpu_custom_call.1']
    #allocation7 [shape = 'u8[2048]{0}', space=vmem, size = 0x800, scoped, tag = 'input window, operand 1, single buffered']
    #allocation8 [shape = 'u8[2048]{0}', space=vmem, size = 0x800, scoped, tag = 'input window, operand 2, single buffered']
    #allocation9 [shape = 's32[1]{0}', space=sflag, size = 0x4, scoped, tag = 'scoped memory for tpu_custom_call.1']
    #allocation10 [shape = 'u8[512]{0}', space=smem, size = 0x200, scoped, tag = 'output window, operand 0, single buffered']
    %8 = vsyncpa [#allocation5], 0
    %9 = vsyncpa [#allocation4], 0
    %10 = vsyncpa [#allocation9], 0
    %11 = vsyncpa [#allocation6], 0
    // Predicated region
    $region2: #{tpu_custom_call.1} parent=1 // pred_check
      _
    $region3: #{tpu_custom_call.1} parent=1 // pred_check_branch
      %13 = sbr.rel (0) target = $region5
    $region4: #{tpu_custom_call.1} parent=1 // pred_region
      %15 = vsyncadd [#allocation5], 0
      %s17 = sshll.u32 %s0, 4
      %s18 = int_to_ptr.hbm [resolvable:$true] %s17
      %20 = dma.hbm_to_smem %s18, 16, [#allocation3], [#allocation5]
    $region5: #{tpu_custom_call.1} parent=1 // pred_fallthru
      _
    // Predicated region
    $region6: #{tpu_custom_call.1} parent=1 // pred_check
      _
    $region7: #{tpu_custom_call.1} parent=1 // pred_check_branch
      %22 = sbr.rel (0) target = $region9
    $region8: #{tpu_custom_call.1} parent=1 // pred_region
      %24 = vsyncadd [#allocation4], 0
      %s26 = sshll.u32 %s1, 4
      %s27 = int_to_ptr.hbm [resolvable:$true] %s26
      %s28 = sshll.u32 [#allocation7], 4
      %s29 = int_to_ptr.vmem [resolvable:$true] %s28
      %31 = dma.hbm_to_vmem [thread:$0]  %s27, 64, %s29, [#allocation4]
    $region9: #{tpu_custom_call.1} parent=1 // pred_fallthru
      _
    // Predicated region
    $region10: #{tpu_custom_call.1} parent=1 // pred_check
      _
    $region11: #{tpu_custom_call.1} parent=1 // pred_check_branch
      %33 = sbr.rel (0) target = $region13
    $region12: #{tpu_custom_call.1} parent=1 // pred_region
      %35 = vsyncadd [#allocation9], 0
      %s37 = sshll.u32 %s2, 4
      %s38 = int_to_ptr.hbm [resolvable:$true] %s37
      %s39 = sshll.u32 [#allocation8], 4
      %s40 = int_to_ptr.vmem [resolvable:$true] %s39
      %42 = dma.hbm_to_vmem [thread:$0]  %s38, 64, %s40, [#allocation9]
    $region13: #{tpu_custom_call.1} parent=1 // pred_fallthru
      _
    // Predicated region
    $region14: #{tpu_custom_call.1} parent=1 // pred_check
      _
    $region15: #{tpu_custom_call.1} parent=1 // pred_check_branch
      %44 = sbr.rel (0) target = $region17
    $region16: #{tpu_custom_call.1} parent=1 // pred_region
      %46 = dma.done [#allocation5], 16
    $region17: #{tpu_custom_call.1} parent=1 // pred_fallthru
      _
    // Predicated region
    $region18: #{tpu_custom_call.1} parent=1 // pred_check
      _
    $region19: #{tpu_custom_call.1} parent=1 // pred_check_branch
      %48 = sbr.rel (0) target = $region21
    $region20: #{tpu_custom_call.1} parent=1 // pred_region
      %50 = dma.done [#allocation4], 64
    $region21: #{tpu_custom_call.1} parent=1 // pred_fallthru
      _
    // Predicated region
    $region22: #{tpu_custom_call.1} parent=1 // pred_check
      _
    $region23: #{tpu_custom_call.1} parent=1 // pred_check_branch
      %52 = sbr.rel (0) target = $region25
    $region24: #{tpu_custom_call.1} parent=1 // pred_region
      %54 = dma.done [#allocation9], 64
    $region25: #{tpu_custom_call.1} parent=1 // pred_fallthru
      _
    %55 = sfence
    %p56 = scmp.eq.s32.totalorder 0, 0
    // Predicated region
    $region26: #{tpu_custom_call.1} parent=1 // pred_check
      %p57 = pneg %p56
    $region27: #{tpu_custom_call.1} parent=1 // pred_check_branch
      %59 = sbr.rel (%p57) target = $region29
    $region28: #{tpu_custom_call.1} parent=1 // pred_region
      %60 = vst [vmem:[#allocation2] sm:$0x1] 0.0
    $region29: #{tpu_custom_call.1} parent=1 // pred_fallthru
      _
    %v61 = vld [vmem:[#allocation7] sm:$0x1]
    %v62 = vld [vmem:[#allocation8] sm:$0x1]
    %v63 = vsub.f32 %v61, %v62
    %v64 = vld [vmem:[#allocation7 + $0x1] sm:$0x1]
    %v65 = vld [vmem:[#allocation8 + $0x1] sm:$0x1]
    %v66 = vsub.f32 %v64, %v65
    %v67 = vld [vmem:[#allocation7 + $0x2] sm:$0x1]
    %v68 = vld [vmem:[#allocation8 + $0x2] sm:$0x1]
    %v69 = vsub.f32 %v67, %v68
    %v70 = vld [vmem:[#allocation7 + $0x3] sm:$0x1]
    %v71 = vld [vmem:[#allocation8 + $0x3] sm:$0x1]
    %v72 = vsub.f32 %v70, %v71
    %s73 = sld [smem:[#allocation3]]
    %s74 = sld [smem:[#allocation3 + $0x1]]
    %s75 = sld [smem:[#allocation3 + $0x2]]
    %s76 = sld [smem:[#allocation3 + $0x3]]
    %v77 = vstv %s73
    %v78 = vmul.f32 %v77, %v63
    %v79 = vmul.f32 %v78, %v63
    %v80 = vstv %s74
    %v81 = vmul.f32 %v80, %v66
    %v82 = vmul.f32 %v81, %v66
    %v83 = vadd.f32 %v79, %v82
    %v84 = vstv %s75
    %v85 = vmul.f32 %v84, %v69
    %v86 = vmul.f32 %v85, %v69
    %v87 = vadd.f32 %v83, %v86
    %v88 = vstv %s76
    %v89 = vmul.f32 %v88, %v72
    %v90 = vmul.f32 %v89, %v72
    %v91 = vadd.f32 %v87, %v90
    %v92 = vld [vmem:[#allocation2] sm:$0x1]
    %v93 = vrsqrt.pop %v91
    %v94 = vmul.f32 %v93, %v91
    %v95 = vmul.f32 %v94, %v93
    %v96 = vmul.f32 0.5, %v95
    %v97 = vsub.f32 1.5, %v96
    %v98 = vmul.f32 %v93, %v97
    %v99 = vmul.f32 %v91, %v98
    %vm100 = vcmp.eq.f32.partialorder %v91, inf
    %v101 = vsel %vm100, %v91, %v99
    %vm102 = vcmp.eq.f32.partialorder %v91, 0.0
    %v103 = vand.u32 %v91, 2147483648
    %v104 = vsel %vm102, %v103, %v101
    %v105 = vadd.f32 %v92, %v104
    %106 = vst [vmem:[#allocation2] sm:$0x1] %v105
    // Predicated region
    $region30: #{tpu_custom_call.1} parent=1 // pred_check
      %p107 = pneg %p56
    $region31: #{tpu_custom_call.1} parent=1 // pred_check_branch
      %109 = sbr.rel (%p107) target = $region33
    $region32: #{tpu_custom_call.1} parent=1 // pred_region
      %v110 = vld [vmem:[#allocation2] sm:$0x1]
      %vm111 = vcmask 1040384
      %v112 = vsel %vm111, %v110, 0.0
      %113 = vadd.xlane.f32.xlu0 %v112
      %v114 = vpop.xlane.xlu0 %113
      %v115 = vrot.slane %v114, 4
      %v116 = vadd.f32 %v114, %v115
      %v117 = vrot.slane %v116, 2
      %v118 = vadd.f32 %v116, %v117
      %v119 = vrot.slane %v118, 1
      %v120 = vadd.f32 %v118, %v119
      %s121 = vtos %v120
      %s122 = smul.f32 %s121, 0.125
      %s123 = scalar_lea.smem [#allocation10], 0
      %124 = sst [smem:[%s123]] %s122
    $region33: #{tpu_custom_call.1} parent=1 // pred_fallthru
      _
    // Predicated region
    $region34: #{tpu_custom_call.1} parent=1 // pred_check
      _
    $region35: #{tpu_custom_call.1} parent=1 // pred_check_branch
      %126 = sbr.rel (0) target = $region37
    $region36: #{tpu_custom_call.1} parent=1 // pred_region
      %128 = vsyncadd [#allocation6], 0
      %s130 = sshll.u32 %s3, 4
      %s131 = int_to_ptr.hbm [resolvable:$true] %s130
      %133 = dma.smem_to_hbm [#allocation10], 16, %s131, [#allocation6]
    $region37: #{tpu_custom_call.1} parent=1 // pred_fallthru
      _
    // Predicated region
    $region38: #{tpu_custom_call.1} parent=1 // pred_check
      _
    $region39: #{tpu_custom_call.1} parent=1 // pred_check_branch
      %135 = sbr.rel (0) target = $region41
    $region40: #{tpu_custom_call.1} parent=1 // pred_region
      %137 = dma.done [#allocation6], 16
    $region41: #{tpu_custom_call.1} parent=1 // pred_fallthru
      _
    %138 = sfence
    %139 = vsyncpa [#allocation4], 1
    %140 = vsyncpa [#allocation9], 1
    %141 = vsyncpa [#allocation5], 1
    %142 = vsyncpa [#allocation6], 1

</llo_original>
